<compile_context>
chip_gen: v7x
topology: tpu7x:2x2x1
jax: 0.10.0
libtpu: 0.0.40
codegen_flags: <defaults>
</compile_context>

<pallas_src>
import math
import numpy as np

import jax
import jax.numpy as jnp
from jax.experimental import pallas as pl
from jax.experimental.pallas import tpu as pltpu


def _pe_kernel(pos_ref, scale_ref, phase_ref, out_ref):
    # pos_ref:   (1,  TN)  float32
    # scale_ref: (2L, 1)   float32   rows 2i and 2i+1 == lbase**i * pi
    # phase_ref: (2L, 1)   float32   0 on even rows (sin), pi/2 on odd rows (cos)
    # out_ref:   (2L, TN)  out dtype
    angles = pos_ref[...] * scale_ref[...] + phase_ref[...]   # (2L, TN) broadcast (VPU)
    out_ref[...] = jnp.sin(angles).astype(out_ref.dtype)      # single EUP pass, dense store


def _reference(pos, pe_embed_b, pe_embed_l):
    """Pure-JAX reference reproducing the PyTorch forward exactly."""
    pos = pos.astype(jnp.float32)
    if pe_embed_b == 0:
        return pos[:, None]
    lbase = float(pe_embed_b)
    levels = int(pe_embed_l)
    pe_list = []
    for i in range(levels):
        t = pos * (lbase ** i) * math.pi
        t = t[None]                                  # unsqueeze(0)
        pe_list += [jnp.sin(t), jnp.cos(t)]
    return jnp.stack(pe_list, axis=1)                # (1, 2*levels, N)


def positional_encoding(pos, pe_embed_b, pe_embed_l, *,
                        tile_n=1024, min_kernel_n=256, out_dtype=jnp.float32):
    """JAX/Pallas equivalent of PositionalEncoding.forward for 1-D `pos`."""
    pos = pos.astype(jnp.float32)
    if pe_embed_b == 0:
        # pe_embed == False path: pure indexing, no kernel needed.
        return pos[:, None]

    lbase = float(pe_embed_b)
    levels = int(pe_embed_l)
    two_l = 2 * levels
    N = pos.shape[0]

    # Tiny problems: XLA's fused elementwise chain beats kernel dispatch overhead.
    if N < min_kernel_n:
        return _reference(pos, pe_embed_b, pe_embed_l).astype(out_dtype)

    # Per-level frequency scales and sin/cos phases, interleaved to match
    # torch.stack order (sin0, cos0, sin1, cos1, ...). Computed in f32 to stay
    # close to the PyTorch f32 multiply order.
    scales = np.empty((two_l, 1), dtype=np.float32)
    phases = np.empty((two_l, 1), dtype=np.float32)
    for i in range(levels):
        s = np.float32(lbase ** i) * np.float32(math.pi)
        scales[2 * i, 0] = s
        scales[2 * i + 1, 0] = s
        phases[2 * i, 0] = np.float32(0.0)
        phases[2 * i + 1, 0] = np.float32(math.pi / 2.0)   # cos(x) = sin(x + pi/2)
    scales = jnp.asarray(scales)
    phases = jnp.asarray(phases)

    # Pad N up to a multiple of the lane tile (tile_n is a multiple of 128).
    assert tile_n % 128 == 0, "tile_n must be a multiple of 128"
    n_pad = pl.cdiv(N, tile_n) * tile_n
    pos2d = pos
    if n_pad != N:
        pos2d = jnp.pad(pos2d, (0, n_pad - N))
    pos2d = pos2d.reshape(1, n_pad)

    grid = (n_pad // tile_n,)

    out = pl.pallas_call(
        _pe_kernel,
        out_shape=jax.ShapeDtypeStruct((two_l, n_pad), out_dtype),
        grid=grid,
        in_specs=[
            pl.BlockSpec((1, tile_n), lambda i: (0, i)),      # pos tile
            pl.BlockSpec((two_l, 1), lambda i: (0, 0)),       # scales (resident)
            pl.BlockSpec((two_l, 1), lambda i: (0, 0)),       # phases (resident)
        ],
        out_specs=pl.BlockSpec((two_l, tile_n), lambda i: (0, i)),
        compiler_params=pltpu.CompilerParams(
            dimension_semantics=("parallel",),                # megacore-shard N on v7x
        ),
    )(pos2d, scales, phases)

    # Drop the lane padding and add the leading dim from unsqueeze(0)+stack(dim=1).
    return out[:, :N][None]                                   # (1, 2*levels, N)


if __name__ == "__main__":
    key = jax.random.PRNGKey(0)

    pe_embed_b = 1.25
    pe_embed_l = 4                                    # embed_length = 8

    # Kernel path: N large enough to dispatch Pallas, not a multiple of 128
    # (exercises the pad/slice logic) and spans multiple lane tiles.
    N = 3000
    pos = jax.random.uniform(key, (N,), dtype=jnp.float32) * 10.0

    out = positional_encoding(pos, pe_embed_b, pe_embed_l, tile_n=1024)
    out = jax.block_until_ready(out)
    ref = _reference(pos, pe_embed_b, pe_embed_l)
    assert out.shape == (1, 2 * pe_embed_l, N), out.shape
    # Tolerance: cos is computed as sin(x + pi/2) and scales are pre-folded in f32,
    # both sub-1e-5 effects but not bit-identical to the torch multiply order.
    np.testing.assert_allclose(np.asarray(out), np.asarray(ref), atol=2e-5, rtol=2e-5)

    # Small-N fallback path (pure JAX, no kernel dispatch).
    pos_small = pos[:64]
    out_small = jax.block_until_ready(
        positional_encoding(pos_small, pe_embed_b, pe_embed_l))
    ref_small = _reference(pos_small, pe_embed_b, pe_embed_l)
    assert out_small.shape == (1, 2 * pe_embed_l, 64), out_small.shape
    np.testing.assert_allclose(np.asarray(out_small), np.asarray(ref_small),
                               atol=2e-5, rtol=2e-5)

    # pe_embed == False branch (pure indexing, no kernel needed).
    out_noembed = jax.block_until_ready(positional_encoding(pos, 0, 0))
    assert out_noembed.shape == (N, 1)

    print("KERNEL_OK")
</pallas_src>

<mosaic_0001>
module attributes {stable_mosaic.version = 11 : i64} {
  func.func @_pe_kernel(%arg0: i32, %arg1: memref<1x1024xf32, #tpu.memory_space<vmem>>, %arg2: memref<8x1xf32, #tpu.memory_space<vmem>>, %arg3: memref<8x1xf32, #tpu.memory_space<vmem>>, %arg4: memref<8x1024xf32, #tpu.memory_space<vmem>>) attributes {dimension_semantics = [#tpu.dimension_semantics<parallel>], iteration_bounds = array<i64: 3>, scalar_prefetch = 0 : i64, scratch_operands = 0 : i64, tpu.core_type = #tpu.core_type<tc>, window_params = [{transform_indices = @transform_0, window_bounds = array<i64: 1, 1024>}, {pipeline_mode = #tpu.pipeline_mode<synchronous>, transform_indices = @transform_1, window_bounds = array<i64: 8, 1>}, {pipeline_mode = #tpu.pipeline_mode<synchronous>, transform_indices = @transform_2, window_bounds = array<i64: 8, 1>}, {transform_indices = @transform_3, window_bounds = array<i64: 8, 1024>}]} {
    %c0 = arith.constant 0 : index
    %c0_0 = arith.constant 0 : index
    %0 = vector.load %arg1[%c0, %c0_0] : memref<1x1024xf32, #tpu.memory_space<vmem>>, vector<1x1024xf32>
    %c0_1 = arith.constant 0 : index
    %c0_2 = arith.constant 0 : index
    %1 = vector.load %arg2[%c0_1, %c0_2] : memref<8x1xf32, #tpu.memory_space<vmem>>, vector<8x1xf32>
    %2 = vector.broadcast %0 : vector<1x1024xf32> to vector<8x1024xf32>
    %3 = vector.broadcast %1 : vector<8x1xf32> to vector<8x1024xf32>
    %4 = arith.mulf %2, %3 : vector<8x1024xf32>
    %c0_3 = arith.constant 0 : index
    %c0_4 = arith.constant 0 : index
    %5 = vector.load %arg3[%c0_3, %c0_4] : memref<8x1xf32, #tpu.memory_space<vmem>>, vector<8x1xf32>
    %6 = vector.broadcast %5 : vector<8x1xf32> to vector<8x1024xf32>
    %7 = arith.addf %4, %6 : vector<8x1024xf32>
    %8 = math.sin %7 : vector<8x1024xf32>
    %c0_5 = arith.constant 0 : index
    %c0_6 = arith.constant 0 : index
    %9 = vector.load %arg4[%c0_5, %c0_6] : memref<8x1024xf32, #tpu.memory_space<vmem>>, vector<8x1024xf32>
    tpu.vector_store %arg4[%c0_5, %c0_6], %8 {strides = array<i32>} : memref<8x1024xf32, #tpu.memory_space<vmem>>, vector<8x1024xf32>,
    return
  }
  func.func @transform_0(%arg0: i32) -> (i32, i32) {
    %c0_i32 = arith.constant 0 : i32
    %c0_i32_0 = arith.constant 0 : i32
    return %c0_i32, %arg0 : i32, i32
  }
  func.func @transform_1(%arg0: i32) -> (i32, i32) {
    %c0_i32 = arith.constant 0 : i32
    %c0_i32_0 = arith.constant 0 : i32
    %c0_i32_1 = arith.constant 0 : i32
    return %c0_i32, %c0_i32_0 : i32, i32
  }
  func.func @transform_2(%arg0: i32) -> (i32, i32) {
    %c0_i32 = arith.constant 0 : i32
    %c0_i32_0 = arith.constant 0 : i32
    %c0_i32_1 = arith.constant 0 : i32
    return %c0_i32, %c0_i32_0 : i32, i32
  }
  func.func @transform_3(%arg0: i32) -> (i32, i32) {
    %c0_i32 = arith.constant 0 : i32
    %c0_i32_0 = arith.constant 0 : i32
    return %c0_i32, %arg0 : i32, i32
  }
}

</mosaic_0001>

<llo_original>
// kernel: tpu_custom_call.1
$region0: #{tpu_custom_call.1}
  #allocation0 [shape = 'u32[]', space=smem, size = 0x4, offset = 0x4, fixed_abs, tag = 'smem constant byte address 0x4 - core index']
  #allocation1 [shape = 'u32[144,128]{1,0:T(1,128)}', space=vmem, size = 0x12000, scoped, tag = 'internal scratch']
  %s0 = inlined_call_operand.hbm [shape: f32[1,3072], index: 0, kind: input, shape index: {}]
  %s1 = inlined_call_operand.vmem [shape: f32[8,1], index: 1, kind: input, shape index: {}]
  %s2 = inlined_call_operand.vmem [shape: f32[8,1], index: 2, kind: input, shape index: {}]
  %s3 = inlined_call_operand.hbm [shape: f32[8,3072], index: 3, kind: output, shape index: {}]
  %s4 = sld [smem:[#allocation0]]
  $region49: #{tpu_custom_call.1} parent=0
    _
  %s6 = ssub.s32 1, %s4
  %s7 = scalar_select 0, %s6, %s4
  $region1: #{tpu_custom_call.1} parent=0
    #allocation2 [shape = 'u8[8192]{0}', space=vmem, size = 0x2000, scoped, tag = 'input window, operand 0']
    #allocation3 [shape = 's32[2]{0}', space=sflag, size = 0x8, scoped, tag = 'scoped memory for tpu_custom_call.1']
    #allocation4 [shape = 's32[2]{0}', space=sflag, size = 0x8, scoped, tag = 'scoped memory for tpu_custom_call.1']
    #allocation5 [shape = 'u8[65536]{0}', space=vmem, size = 0x10000, scoped, tag = 'output window, operand 0']
    %8 = vsyncpa [#allocation3], 0
    %s9 = scalar_lea.sflag [#allocation3], 1
    %10 = vsyncpa %s9, 0
    %11 = vsyncpa [#allocation4], 0
    %s12 = scalar_lea.sflag [#allocation4], 1
    %13 = vsyncpa %s12, 0
    loop: start=0, step=1, limit=5
    $region2: #{tpu_custom_call.1} parent=1 // loop_pre_header
      _
    $region3: #{tpu_custom_call.1} parent=1 // loop_header
      %s15 = sphi 0, %s19
      %p16 = scmp.ge.s32.totalorder %s15, 5
      %s25 = sphi 0, %s27
      %s28 = sphi 0, %s25
      %s29 = sphi 0, %s28
      %s45 = sphi 0, %s29
      %s49 = sphi 0, %s49
      %s51 = sphi 0, %s49
      %s52 = sphi 0, %s51
      %s66 = sphi 0, %s52
      %s70 = sphi 0, %s70
      %s72 = sphi 0, %s70
      %s73 = sphi 0, %s72
      %s87 = sphi 0, %s73
      %s93 = sphi 0, %s95
      %s96 = sphi 0, %s93
      %s97 = sphi 0, %s96
      %s113 = sphi 0, %s97
    $region4: #{tpu_custom_call.1} parent=1 // loop_header_branch
      %18 = sbr.rel (%p16) target = $region8
    $region5: #{tpu_custom_call.1} parent=1 // loop_body
      %s20 = ssub.s32 %s15, 1
      %s21 = ssub.s32 %s15, 2
      %s22 = sadd.s32 %s15, 1
      %s23 = ssub.s32 %s15, %s22
      %p24 = scmp.eq.s32.totalorder %s23, 0
      %s26 = sadd.s32 %s25, 1
      %s27 = scalar_select %p24, %s25, %s26
      %p30 = pneg %p24
      %p31 = scmp.eq.s32.totalorder %s15, 2
      %p32 = por %p30, %p31
      %p33 = scmp.ne.s32.totalorder %s25, %s28
      %p34 = scmp.eq.s32.totalorder %s15, 0
      %p35 = por %p33, %p34
      %p36 = scmp.ne.s32.totalorder %s25, %s28
      %p37 = scmp.eq.s32.totalorder %s20, 2
      %p38 = por %p36, %p37
      %p39 = scmp.ne.s32.totalorder %s28, %s29
      %p40 = scmp.eq.s32.totalorder %s20, 0
      %p41 = por %p39, %p40
      %p42 = scmp.ne.s32.totalorder %s28, %s29
      %p43 = scmp.eq.s32.totalorder %s21, 2
      %p44 = por %p42, %p43
      %p46 = scmp.ne.s32.totalorder %s29, %s45
      %p47 = scmp.eq.s32.totalorder %s21, 0
      %p48 = por %p46, %p47
      %s50 = sadd.s32 %s49, 1
      %p53 = scmp.eq.s32.totalorder %s15, 2
      %p54 = scmp.ne.s32.totalorder %s49, %s51
      %p55 = scmp.eq.s32.totalorder %s15, 0
      %p56 = por %p54, %p55
      %p57 = scmp.ne.s32.totalorder %s49, %s51
      %p58 = scmp.eq.s32.totalorder %s20, 2
      %p59 = por %p57, %p58
      %p60 = scmp.ne.s32.totalorder %s51, %s52
      %p61 = scmp.eq.s32.totalorder %s20, 0
      %p62 = por %p60, %p61
      %p63 = scmp.ne.s32.totalorder %s51, %s52
      %p64 = scmp.eq.s32.totalorder %s21, 2
      %p65 = por %p63, %p64
      %p67 = scmp.ne.s32.totalorder %s52, %s66
      %p68 = scmp.eq.s32.totalorder %s21, 0
      %p69 = por %p67, %p68
      %s71 = sadd.s32 %s70, 1
      %p74 = scmp.eq.s32.totalorder %s15, 2
      %p75 = scmp.ne.s32.totalorder %s70, %s72
      %p76 = scmp.eq.s32.totalorder %s15, 0
      %p77 = por %p75, %p76
      %p78 = scmp.ne.s32.totalorder %s70, %s72
      %p79 = scmp.eq.s32.totalorder %s20, 2
      %p80 = por %p78, %p79
      %p81 = scmp.ne.s32.totalorder %s72, %s73
      %p82 = scmp.eq.s32.totalorder %s20, 0
      %p83 = por %p81, %p82
      %p84 = scmp.ne.s32.totalorder %s72, %s73
      %p85 = scmp.eq.s32.totalorder %s21, 2
      %p86 = por %p84, %p85
      %p88 = scmp.ne.s32.totalorder %s73, %s87
      %p89 = scmp.eq.s32.totalorder %s21, 0
      %p90 = por %p88, %p89
      %s91 = ssub.s32 %s15, %s22
      %p92 = scmp.eq.s32.totalorder %s91, 0
      %s94 = sadd.s32 %s93, 1
      %s95 = scalar_select %p92, %s93, %s94
      %p98 = pneg %p92
      %p99 = scmp.eq.s32.totalorder %s15, 2
      %p100 = por %p98, %p99
      %p101 = scmp.ne.s32.totalorder %s93, %s96
      %p102 = scmp.eq.s32.totalorder %s15, 0
      %p103 = por %p101, %p102
      %p104 = scmp.ne.s32.totalorder %s93, %s96
      %p105 = scmp.eq.s32.totalorder %s20, 2
      %p106 = por %p104, %p105
      %p107 = scmp.ne.s32.totalorder %s96, %s97
      %p108 = scmp.eq.s32.totalorder %s20, 0
      %p109 = por %p107, %p108
      %p110 = scmp.ne.s32.totalorder %s96, %s97
      %p111 = scmp.eq.s32.totalorder %s21, 2
      %p112 = por %p110, %p111
      %p114 = scmp.ne.s32.totalorder %s97, %s113
      %p115 = scmp.eq.s32.totalorder %s21, 0
      %p116 = por %p114, %p115
      %p117 = scmp.le.s32.totalorder 1, %s15
      %p118 = scmp.lt.s32.totalorder %s15, 4
      %p119 = pnand %p117, %p118
      %p120 = pneg %p119
      // Predicated region
      $region9: #{tpu_custom_call.1} parent=5 // pred_check
        _
      $region10: #{tpu_custom_call.1} parent=5 // pred_check_branch
        %122 = sbr.rel (%p119) target = $region12
      $region11: #{tpu_custom_call.1} parent=5 // pred_region
        %s123 = ssub.s32 %s15, 1
        // Predicated region
        $region13: #{tpu_custom_call.1} parent=11 // pred_check
          %p124 = pneg %p62
        $region14: #{tpu_custom_call.1} parent=11 // pred_check_branch
          %126 = sbr.rel (%p124) target = $region16
        $region15: #{tpu_custom_call.1} parent=11 // pred_region
          _
        $region16: #{tpu_custom_call.1} parent=11 // pred_fallthru
          _
        // Predicated region
        $region17: #{tpu_custom_call.1} parent=11 // pred_check
          %p127 = pneg %p83
        $region18: #{tpu_custom_call.1} parent=11 // pred_check_branch
          %129 = sbr.rel (%p127) target = $region20
        $region19: #{tpu_custom_call.1} parent=11 // pred_region
          _
        $region20: #{tpu_custom_call.1} parent=11 // pred_fallthru
          _
      $region12: #{tpu_custom_call.1} parent=5 // pred_fallthru
        _
      %p130 = scmp.lt.s32.totalorder %s15, 3
      // Predicated region
      $region21: #{tpu_custom_call.1} parent=5 // pred_check
        %p131 = pneg %p130
      $region22: #{tpu_custom_call.1} parent=5 // pred_check_branch
        %133 = sbr.rel (%p131) target = $region24
      $region23: #{tpu_custom_call.1} parent=5 // pred_region
        // Predicated region
        $region25: #{tpu_custom_call.1} parent=23 // pred_check
          %p134 = pneg %p35
        $region26: #{tpu_custom_call.1} parent=23 // pred_check_branch
          %136 = sbr.rel (%p134) target = $region28
        $region27: #{tpu_custom_call.1} parent=23 // pred_region
          %s137 = sand.u32 %s25, 1
          %s138 = scalar_lea.sflag [#allocation3], %s137
          %s139 = sand.u32 %s25, 1
          %s140 = smul.addr %s139, 8
          %s141 = scalar_lea.vmem [#allocation2], %s140
          %s142 = smul.u32 8, %s15
          %s144 = ssub.s32 128, 128
          %145 = vsyncadd %s138, %s144
          %s146 = smul.addr %s142, 16
          %s147 = scalar_lea.hbm %s0, %s146
          %s149 = sshll.u32 %s141, 4
          %s150 = int_to_ptr.vmem [resolvable:$true] %s149
          %152 = dma.hbm_to_vmem [thread:$0]  %s147, 128, %s150, %s138
        $region28: #{tpu_custom_call.1} parent=23 // pred_fallthru
          _
      $region24: #{tpu_custom_call.1} parent=5 // pred_fallthru
        _
      %p153 = scmp.le.s32.totalorder 1, %s15
      %p154 = scmp.lt.s32.totalorder %s15, 4
      %p155 = pnand %p153, %p154
      %p156 = pneg %p155
      // Predicated region
      $region29: #{tpu_custom_call.1} parent=5 // pred_check
        _
      $region30: #{tpu_custom_call.1} parent=5 // pred_check_branch
        %158 = sbr.rel (%p155) target = $region32
      $region31: #{tpu_custom_call.1} parent=5 // pred_region
        %s159 = ssub.s32 %s15, 1
        %s160 = sand.u32 %s28, 1
        %s161 = scalar_lea.sflag [#allocation3], %s160
        %s162 = sand.u32 %s28, 1
        %s163 = smul.addr %s162, 8
        %s164 = scalar_lea.vmem [#allocation2], %s163
        // Predicated region
        $region33: #{tpu_custom_call.1} parent=31 // pred_check
          %p165 = pneg %p41
        $region34: #{tpu_custom_call.1} parent=31 // pred_check_branch
          %167 = sbr.rel (%p165) target = $region36
        $region35: #{tpu_custom_call.1} parent=31 // pred_region
          %168 = dma.done %s161, 128
        $region36: #{tpu_custom_call.1} parent=31 // pred_fallthru
          _
        %s169 = sand.u32 %s28, 1
        %s170 = scalar_lea.sflag [#allocation3], %s169
        %s171 = sand.u32 %s28, 1
        %s172 = smul.addr %s171, 8
        %s173 = scalar_lea.vmem [#allocation2], %s172
        %p174 = pneg %p41
        %p175 = pneg %p38
        %p176 = pneg %p62
        %p177 = pneg %p59
        %p178 = pneg %p83
        %p179 = pneg %p80
        %p180 = pneg %p109
        %p181 = pneg %p106
        %s182 = sand.u32 %s96, 1
        %s183 = scalar_lea.sflag [#allocation4], %s182
        %s184 = sand.u32 %s96, 1
        %s185 = smul.addr %s184, 64
        %s186 = scalar_lea.vmem [#allocation5], %s185
        %s187 = smul.u32 8, %s20
        %s188 = smul.u32 8, %s20
        %v189 = vld [vmem:[%s164] sm:$0xff]
        %v190 = vld [vmem:[%s1] sm:$0xff]
        %v192 = vlaneseq
        %v193 = vshrl.u32 %v192, 7
        %v194 = vsub.s32 0, %v193
        %v195 = vrot.slane %v189, %v194
        %v196 = vlaneseq
        %v197 = vshrl.u32 %v196, 7
        %v198 = vsub.s32 1, %v197
        %v199 = vrot.slane %v189, %v198
        %v200 = vlaneseq
        %v201 = vshrl.u32 %v200, 7
        %v202 = vsub.s32 2, %v201
        %v203 = vrot.slane %v189, %v202
        %v204 = vlaneseq
        %v205 = vshrl.u32 %v204, 7
        %v206 = vsub.s32 3, %v205
        %v207 = vrot.slane %v189, %v206
        %v208 = vlaneseq
        %v209 = vshrl.u32 %v208, 7
        %v210 = vsub.s32 4, %v209
        %v211 = vrot.slane %v189, %v210
        %v212 = vlaneseq
        %v213 = vshrl.u32 %v212, 7
        %v214 = vsub.s32 5, %v213
        %v215 = vrot.slane %v189, %v214
        %v216 = vlaneseq
        %v217 = vshrl.u32 %v216, 7
        %v218 = vsub.s32 6, %v217
        %v219 = vrot.slane %v189, %v218
        %v220 = vlaneseq
        %v221 = vshrl.u32 %v220, 7
        %v222 = vsub.s32 7, %v221
        %v223 = vrot.slane %v189, %v222
        %233 = vset.pattern.permute.xlu0 0
        %234 = vperm.xlu0 %233, %v190
        %v235 = vpop.permute.xlu0 %234
        %v237 = vmul.f32 %v195, %v235
        %v238 = vmul.f32 %v199, %v235
        %v239 = vmul.f32 %v203, %v235
        %v240 = vmul.f32 %v207, %v235
        %v241 = vmul.f32 %v211, %v235
        %v242 = vmul.f32 %v215, %v235
        %v243 = vmul.f32 %v219, %v235
        %v244 = vmul.f32 %v223, %v235
        %v245 = vld [vmem:[%s2] sm:$0xff]
        %247 = vset.pattern.permute.xlu0 0
        %248 = vperm.xlu0 %247, %v245
        %v249 = vpop.permute.xlu0 %248
        %v251 = vadd.f32 %v237, %v249
        %v252 = vadd.f32 %v238, %v249
        %v253 = vadd.f32 %v239, %v249
        %v254 = vadd.f32 %v240, %v249
        %v255 = vadd.f32 %v241, %v249
        %v256 = vadd.f32 %v242, %v249
        %v257 = vadd.f32 %v243, %v249
        %v258 = vadd.f32 %v244, %v249
        %v259 = vand.u32 2147483647, %v251
        %vm260 = vcmp.le.f32.partialorder %v259, 0.7853982
        %vm261 = vcmp.lt.s32.totalorder %v251, 0
        %v262 = vand.u32 %v251, 2139095040
        %v263 = vshrl.u32 %v262, 23
        %v264 = vsub.s32 %v263, 127
        %v265 = vand.u32 2147483647, %v251
        %v266 = vand.u32 %v265, 8388607
        %v267 = vor.u32 %v266, 8388608
        %v268 = vsub.s32 0, %v267
        %v269 = vadd.s32 %v264, 1
        %vm270 = vcmp.gt.s32.totalorder %v269, 0
        %v271 = vsel %vm270, %v269, 0
        %v272 = vshrl.u32 %v271, 5
        %v273 = vand.u32 %v271, 31
        %v274 = vsub.s32 32, %v273
        %v275 = vshrl.u32 683565275, %v274
        %v276 = vshll.u32 683565275, %v273
        %v277 = vshrl.u32 2475754826, %v274
        %v278 = vor.u32 %v276, %v277
        %v279 = vshll.u32 2475754826, %v273
        %v280 = vshrl.u32 2131351028, %v274
        %v281 = vor.u32 %v279, %v280
        %v282 = vshll.u32 2131351028, %v273
        %v283 = vshrl.u32 2102212464, %v274
        %v284 = vor.u32 %v282, %v283
        %v285 = vshll.u32 2102212464, %v273
        %v286 = vshrl.u32 920167782, %v274
        %v287 = vor.u32 %v285, %v286
        %v288 = vshll.u32 920167782, %v273
        %v289 = vshrl.u32 1326507024, %v274
        %v290 = vor.u32 %v288, %v289
        %vm291 = vcmp.lt.s32.totalorder %v272, 1
        %vm292 = vcmp.lt.s32.totalorder %v272, 2
        %vm293 = vcmp.lt.s32.totalorder %v272, 3
        %vm294 = vcmp.lt.s32.totalorder %v272, 4
        %v295 = vsel %vm291, %v275, %v278
        %v296 = vsel %vm294, %v284, 2102212464
        %v297 = vsel %vm293, %v281, %v296
        %v298 = vsel %vm292, %v295, %v297
        %v299 = vsel %vm291, %v278, %v281
        %v300 = vsel %vm294, %v287, 920167782
        %v301 = vsel %vm293, %v284, %v300
        %v302 = vsel %vm292, %v299, %v301
        %v303 = vsel %vm291, %v281, %v284
        %v304 = vsel %vm294, %v290, 1326507024
        %v305 = vsel %vm293, %v287, %v304
        %v306 = vsel %vm292, %v303, %v305
        %v307 = vshll.u32 %v267, 8
        %v308 = vmul.u32.u64.compose %v307, %v306
        %v309 = vextract.low.u32 %v308
        %v310 = vextract.high.u32 %v308
        %v311 = vmul.u32.u64.compose %v307, %v302
        %v312 = vextract.low.u32 %v311
        %v313 = vextract.high.u32 %v311
        %v314 = vmul.u32 %v307, %v298
        %v315 = vadd.s32 %v310, %v312
        %vm316 = vc.u32 %v310, %v312
        %v317 = vadd.s32 %v313, 1
        %v318 = vsel %vm316, %v317, %v313
        %v319 = vadd.s32 %v314, %v318
        %v320 = vadd.s32 %v319, 536870912
        %v321 = vshrl.u32 %v320, 30
        %v322 = vshll.u32 %v321, 30
        %v323 = vsub.s32 %v319, %v322
        %vm324 = vcmp.lt.s32.totalorder %v323, 0
        %v325 = vsub.s32 0, %v323
        %v326 = vsel %vm324, %v325, %v323
        %v327 = vclz %v326
        %v328 = vsub.s32 %v327, 2
        %vm329 = vcmp.gt.s32.totalorder 0, %v328
        %v330 = vsel %vm329, 0, %v328
        %v331 = vsub.s32 32, %v330
        %v332 = vshll.u32 %v323, %v330
        %v333 = vshrl.u32 %v315, %v331
        %v334 = vor.u32 %v332, %v333
        %v335 = vsub.s32 4294967266, %v330
        %v336 = vadd.s32 %v335, 127
        %v337 = vshll.u32 %v336, 23
        %v338 = vor.u32 4788187, %v337
        %v339 = vand.u32 2147483647, %v338
        %v341 = vcvt.s32.f32 %v334
        %v342 = vmul.f32 %v341, %v339
        %v343 = vxor.u32 %v342, 2147483648
        %v344 = vsel %vm261, %v343, %v342
        %v345 = vsub.s32 4, %v321
        %v346 = vsel %vm261, %v345, %v321
        %v347 = vsel %vm260, %v251, %v344
        %v348 = vsel %vm260, 0, %v346
        %v349 = vcosq.f32.pop %v347
        %v350 = vsinq.f32.pop %v347
        %vm351 = vweird.f32 %v251
        %v352 = vadd.s32 %v348, 3
        %v353 = vand.u32 %v352, 3
        %vm354 = vcmp.lt.s32.totalorder %v353, 2
        %vm355 = vcmp.eq.s32.totalorder %v353, 0
        %v356 = vxor.u32 %v350, 2147483648
        %v357 = vsel %vm355, %v349, %v356
        %vm358 = vcmp.eq.s32.totalorder %v353, 2
        %v359 = vxor.u32 %v349, 2147483648
        %v360 = vsel %vm358, %v359, %v350
        %v361 = vsel %vm354, %v357, %v360
        %v362 = vsel %vm351, nan, %v361
        %v363 = vand.u32 2147483647, %v252
        %vm364 = vcmp.le.f32.partialorder %v363, 0.7853982
        %vm365 = vcmp.lt.s32.totalorder %v252, 0
        %v366 = vand.u32 %v252, 2139095040
        %v367 = vshrl.u32 %v366, 23
        %v368 = vsub.s32 %v367, 127
        %v369 = vand.u32 2147483647, %v252
        %v370 = vand.u32 %v369, 8388607
        %v371 = vor.u32 %v370, 8388608
        %v372 = vsub.s32 0, %v371
        %v373 = vadd.s32 %v368, 1
        %vm374 = vcmp.gt.s32.totalorder %v373, 0
        %v375 = vsel %vm374, %v373, 0
        %v376 = vshrl.u32 %v375, 5
        %v377 = vand.u32 %v375, 31
        %v378 = vsub.s32 32, %v377
        %v379 = vshrl.u32 683565275, %v378
        %v380 = vshll.u32 683565275, %v377
        %v381 = vshrl.u32 2475754826, %v378
        %v382 = vor.u32 %v380, %v381
        %v383 = vshll.u32 2475754826, %v377
        %v384 = vshrl.u32 2131351028, %v378
        %v385 = vor.u32 %v383, %v384
        %v386 = vshll.u32 2131351028, %v377
        %v387 = vshrl.u32 2102212464, %v378
        %v388 = vor.u32 %v386, %v387
        %v389 = vshll.u32 2102212464, %v377
        %v390 = vshrl.u32 920167782, %v378
        %v391 = vor.u32 %v389, %v390
        %v392 = vshll.u32 920167782, %v377
        %v393 = vshrl.u32 1326507024, %v378
        %v394 = vor.u32 %v392, %v393
        %vm395 = vcmp.lt.s32.totalorder %v376, 1
        %vm396 = vcmp.lt.s32.totalorder %v376, 2
        %vm397 = vcmp.lt.s32.totalorder %v376, 3
        %vm398 = vcmp.lt.s32.totalorder %v376, 4
        %v399 = vsel %vm395, %v379, %v382
        %v400 = vsel %vm398, %v388, 2102212464
        %v401 = vsel %vm397, %v385, %v400
        %v402 = vsel %vm396, %v399, %v401
        %v403 = vsel %vm395, %v382, %v385
        %v404 = vsel %vm398, %v391, 920167782
        %v405 = vsel %vm397, %v388, %v404
        %v406 = vsel %vm396, %v403, %v405
        %v407 = vsel %vm395, %v385, %v388
        %v408 = vsel %vm398, %v394, 1326507024
        %v409 = vsel %vm397, %v391, %v408
        %v410 = vsel %vm396, %v407, %v409
        %v411 = vshll.u32 %v371, 8
        %v412 = vmul.u32.u64.compose %v411, %v410
        %v413 = vextract.low.u32 %v412
        %v414 = vextract.high.u32 %v412
        %v415 = vmul.u32.u64.compose %v411, %v406
        %v416 = vextract.low.u32 %v415
        %v417 = vextract.high.u32 %v415
        %v418 = vmul.u32 %v411, %v402
        %v419 = vadd.s32 %v414, %v416
        %vm420 = vc.u32 %v414, %v416
        %v421 = vadd.s32 %v417, 1
        %v422 = vsel %vm420, %v421, %v417
        %v423 = vadd.s32 %v418, %v422
        %v424 = vadd.s32 %v423, 536870912
        %v425 = vshrl.u32 %v424, 30
        %v426 = vshll.u32 %v425, 30
        %v427 = vsub.s32 %v423, %v426
        %vm428 = vcmp.lt.s32.totalorder %v427, 0
        %v429 = vsub.s32 0, %v427
        %v430 = vsel %vm428, %v429, %v427
        %v431 = vclz %v430
        %v432 = vsub.s32 %v431, 2
        %vm433 = vcmp.gt.s32.totalorder 0, %v432
        %v434 = vsel %vm433, 0, %v432
        %v435 = vsub.s32 32, %v434
        %v436 = vshll.u32 %v427, %v434
        %v437 = vshrl.u32 %v419, %v435
        %v438 = vor.u32 %v436, %v437
        %v439 = vsub.s32 4294967266, %v434
        %v440 = vadd.s32 %v439, 127
        %v441 = vshll.u32 %v440, 23
        %v442 = vor.u32 4788187, %v441
        %v443 = vand.u32 2147483647, %v442
        %v445 = vcvt.s32.f32 %v438
        %v446 = vmul.f32 %v445, %v443
        %v447 = vxor.u32 %v446, 2147483648
        %v448 = vsel %vm365, %v447, %v446
        %v449 = vsub.s32 4, %v425
        %v450 = vsel %vm365, %v449, %v425
        %v451 = vsel %vm364, %v252, %v448
        %v452 = vsel %vm364, 0, %v450
        %v453 = vcosq.f32.pop %v451
        %v454 = vsinq.f32.pop %v451
        %vm455 = vweird.f32 %v252
        %v456 = vadd.s32 %v452, 3
        %v457 = vand.u32 %v456, 3
        %vm458 = vcmp.lt.s32.totalorder %v457, 2
        %vm459 = vcmp.eq.s32.totalorder %v457, 0
        %v460 = vxor.u32 %v454, 2147483648
        %v461 = vsel %vm459, %v453, %v460
        %vm462 = vcmp.eq.s32.totalorder %v457, 2
        %v463 = vxor.u32 %v453, 2147483648
        %v464 = vsel %vm462, %v463, %v454
        %v465 = vsel %vm458, %v461, %v464
        %v466 = vsel %vm455, nan, %v465
        %v467 = vand.u32 2147483647, %v253
        %vm468 = vcmp.le.f32.partialorder %v467, 0.7853982
        %vm469 = vcmp.lt.s32.totalorder %v253, 0
        %v470 = vand.u32 %v253, 2139095040
        %v471 = vshrl.u32 %v470, 23
        %v472 = vsub.s32 %v471, 127
        %v473 = vand.u32 2147483647, %v253
        %v474 = vand.u32 %v473, 8388607
        %v475 = vor.u32 %v474, 8388608
        %v476 = vsub.s32 0, %v475
        %v477 = vadd.s32 %v472, 1
        %vm478 = vcmp.gt.s32.totalorder %v477, 0
        %v479 = vsel %vm478, %v477, 0
        %v480 = vshrl.u32 %v479, 5
        %v481 = vand.u32 %v479, 31
        %v482 = vsub.s32 32, %v481
        %v483 = vshrl.u32 683565275, %v482
        %v484 = vshll.u32 683565275, %v481
        %v485 = vshrl.u32 2475754826, %v482
        %v486 = vor.u32 %v484, %v485
        %v487 = vshll.u32 2475754826, %v481
        %v488 = vshrl.u32 2131351028, %v482
        %v489 = vor.u32 %v487, %v488
        %v490 = vshll.u32 2131351028, %v481
        %v491 = vshrl.u32 2102212464, %v482
        %v492 = vor.u32 %v490, %v491
        %v493 = vshll.u32 2102212464, %v481
        %v494 = vshrl.u32 920167782, %v482
        %v495 = vor.u32 %v493, %v494
        %v496 = vshll.u32 920167782, %v481
        %v497 = vshrl.u32 1326507024, %v482
        %v498 = vor.u32 %v496, %v497
        %vm499 = vcmp.lt.s32.totalorder %v480, 1
        %vm500 = vcmp.lt.s32.totalorder %v480, 2
        %vm501 = vcmp.lt.s32.totalorder %v480, 3
        %vm502 = vcmp.lt.s32.totalorder %v480, 4
        %v503 = vsel %vm499, %v483, %v486
        %v504 = vsel %vm502, %v492, 2102212464
        %v505 = vsel %vm501, %v489, %v504
        %v506 = vsel %vm500, %v503, %v505
        %v507 = vsel %vm499, %v486, %v489
        %v508 = vsel %vm502, %v495, 920167782
        %v509 = vsel %vm501, %v492, %v508
        %v510 = vsel %vm500, %v507, %v509
        %v511 = vsel %vm499, %v489, %v492
        %v512 = vsel %vm502, %v498, 1326507024
        %v513 = vsel %vm501, %v495, %v512
        %v514 = vsel %vm500, %v511, %v513
        %v515 = vshll.u32 %v475, 8
        %v516 = vmul.u32.u64.compose %v515, %v514
        %v517 = vextract.low.u32 %v516
        %v518 = vextract.high.u32 %v516
        %v519 = vmul.u32.u64.compose %v515, %v510
        %v520 = vextract.low.u32 %v519
        %v521 = vextract.high.u32 %v519
        %v522 = vmul.u32 %v515, %v506
        %v523 = vadd.s32 %v518, %v520
        %vm524 = vc.u32 %v518, %v520
        %v525 = vadd.s32 %v521, 1
        %v526 = vsel %vm524, %v525, %v521
        %v527 = vadd.s32 %v522, %v526
        %v528 = vadd.s32 %v527, 536870912
        %v529 = vshrl.u32 %v528, 30
        %v530 = vshll.u32 %v529, 30
        %v531 = vsub.s32 %v527, %v530
        %vm532 = vcmp.lt.s32.totalorder %v531, 0
        %v533 = vsub.s32 0, %v531
        %v534 = vsel %vm532, %v533, %v531
        %v535 = vclz %v534
        %v536 = vsub.s32 %v535, 2
        %vm537 = vcmp.gt.s32.totalorder 0, %v536
        %v538 = vsel %vm537, 0, %v536
        %v539 = vsub.s32 32, %v538
        %v540 = vshll.u32 %v531, %v538
        %v541 = vshrl.u32 %v523, %v539
        %v542 = vor.u32 %v540, %v541
        %v543 = vsub.s32 4294967266, %v538
        %v544 = vadd.s32 %v543, 127
        %v545 = vshll.u32 %v544, 23
        %v546 = vor.u32 4788187, %v545
        %v547 = vand.u32 2147483647, %v546
        %v549 = vcvt.s32.f32 %v542
        %v550 = vmul.f32 %v549, %v547
        %v551 = vxor.u32 %v550, 2147483648
        %v552 = vsel %vm469, %v551, %v550
        %v553 = vsub.s32 4, %v529
        %v554 = vsel %vm469, %v553, %v529
        %v555 = vsel %vm468, %v253, %v552
        %v556 = vsel %vm468, 0, %v554
        %v557 = vcosq.f32.pop %v555
        %v558 = vsinq.f32.pop %v555
        %vm559 = vweird.f32 %v253
        %v560 = vadd.s32 %v556, 3
        %v561 = vand.u32 %v560, 3
        %vm562 = vcmp.lt.s32.totalorder %v561, 2
        %vm563 = vcmp.eq.s32.totalorder %v561, 0
        %v564 = vxor.u32 %v558, 2147483648
        %v565 = vsel %vm563, %v557, %v564
        %vm566 = vcmp.eq.s32.totalorder %v561, 2
        %v567 = vxor.u32 %v557, 2147483648
        %v568 = vsel %vm566, %v567, %v558
        %v569 = vsel %vm562, %v565, %v568
        %v570 = vsel %vm559, nan, %v569
        %v571 = vand.u32 2147483647, %v254
        %vm572 = vcmp.le.f32.partialorder %v571, 0.7853982
        %vm573 = vcmp.lt.s32.totalorder %v254, 0
        %v574 = vand.u32 %v254, 2139095040
        %v575 = vshrl.u32 %v574, 23
        %v576 = vsub.s32 %v575, 127
        %v577 = vand.u32 2147483647, %v254
        %v578 = vand.u32 %v577, 8388607
        %v579 = vor.u32 %v578, 8388608
        %v580 = vsub.s32 0, %v579
        %v581 = vadd.s32 %v576, 1
        %vm582 = vcmp.gt.s32.totalorder %v581, 0
        %v583 = vsel %vm582, %v581, 0
        %v584 = vshrl.u32 %v583, 5
        %v585 = vand.u32 %v583, 31
        %v586 = vsub.s32 32, %v585
        %v587 = vshrl.u32 683565275, %v586
        %v588 = vshll.u32 683565275, %v585
        %v589 = vshrl.u32 2475754826, %v586
        %v590 = vor.u32 %v588, %v589
        %v591 = vshll.u32 2475754826, %v585
        %v592 = vshrl.u32 2131351028, %v586
        %v593 = vor.u32 %v591, %v592
        %v594 = vshll.u32 2131351028, %v585
        %v595 = vshrl.u32 2102212464, %v586
        %v596 = vor.u32 %v594, %v595
        %v597 = vshll.u32 2102212464, %v585
        %v598 = vshrl.u32 920167782, %v586
        %v599 = vor.u32 %v597, %v598
        %v600 = vshll.u32 920167782, %v585
        %v601 = vshrl.u32 1326507024, %v586
        %v602 = vor.u32 %v600, %v601
        %vm603 = vcmp.lt.s32.totalorder %v584, 1
        %vm604 = vcmp.lt.s32.totalorder %v584, 2
        %vm605 = vcmp.lt.s32.totalorder %v584, 3
        %vm606 = vcmp.lt.s32.totalorder %v584, 4
        %v607 = vsel %vm603, %v587, %v590
        %v608 = vsel %vm606, %v596, 2102212464
        %v609 = vsel %vm605, %v593, %v608
        %v610 = vsel %vm604, %v607, %v609
        %v611 = vsel %vm603, %v590, %v593
        %v612 = vsel %vm606, %v599, 920167782
        %v613 = vsel %vm605, %v596, %v612
        %v614 = vsel %vm604, %v611, %v613
        %v615 = vsel %vm603, %v593, %v596
        %v616 = vsel %vm606, %v602, 1326507024
        %v617 = vsel %vm605, %v599, %v616
        %v618 = vsel %vm604, %v615, %v617
        %v619 = vshll.u32 %v579, 8
        %v620 = vmul.u32.u64.compose %v619, %v618
        %v621 = vextract.low.u32 %v620
        %v622 = vextract.high.u32 %v620
        %v623 = vmul.u32.u64.compose %v619, %v614
        %v624 = vextract.low.u32 %v623
        %v625 = vextract.high.u32 %v623
        %v626 = vmul.u32 %v619, %v610
        %v627 = vadd.s32 %v622, %v624
        %vm628 = vc.u32 %v622, %v624
        %v629 = vadd.s32 %v625, 1
        %v630 = vsel %vm628, %v629, %v625
        %v631 = vadd.s32 %v626, %v630
        %v632 = vadd.s32 %v631, 536870912
        %v633 = vshrl.u32 %v632, 30
        %v634 = vshll.u32 %v633, 30
        %v635 = vsub.s32 %v631, %v634
        %vm636 = vcmp.lt.s32.totalorder %v635, 0
        %v637 = vsub.s32 0, %v635
        %v638 = vsel %vm636, %v637, %v635
        %v639 = vclz %v638
        %v640 = vsub.s32 %v639, 2
        %vm641 = vcmp.gt.s32.totalorder 0, %v640
        %v642 = vsel %vm641, 0, %v640
        %v643 = vsub.s32 32, %v642
        %v644 = vshll.u32 %v635, %v642
        %v645 = vshrl.u32 %v627, %v643
        %v646 = vor.u32 %v644, %v645
        %v647 = vsub.s32 4294967266, %v642
        %v648 = vadd.s32 %v647, 127
        %v649 = vshll.u32 %v648, 23
        %v650 = vor.u32 4788187, %v649
        %v651 = vand.u32 2147483647, %v650
        %v653 = vcvt.s32.f32 %v646
        %v654 = vmul.f32 %v653, %v651
        %v655 = vxor.u32 %v654, 2147483648
        %v656 = vsel %vm573, %v655, %v654
        %v657 = vsub.s32 4, %v633
        %v658 = vsel %vm573, %v657, %v633
        %v659 = vsel %vm572, %v254, %v656
        %v660 = vsel %vm572, 0, %v658
        %v661 = vcosq.f32.pop %v659
        %v662 = vsinq.f32.pop %v659
        %vm663 = vweird.f32 %v254
        %v664 = vadd.s32 %v660, 3
        %v665 = vand.u32 %v664, 3
        %vm666 = vcmp.lt.s32.totalorder %v665, 2
        %vm667 = vcmp.eq.s32.totalorder %v665, 0
        %v668 = vxor.u32 %v662, 2147483648
        %v669 = vsel %vm667, %v661, %v668
        %vm670 = vcmp.eq.s32.totalorder %v665, 2
        %v671 = vxor.u32 %v661, 2147483648
        %v672 = vsel %vm670, %v671, %v662
        %v673 = vsel %vm666, %v669, %v672
        %v674 = vsel %vm663, nan, %v673
        %v675 = vand.u32 2147483647, %v255
        %vm676 = vcmp.le.f32.partialorder %v675, 0.7853982
        %vm677 = vcmp.lt.s32.totalorder %v255, 0
        %v678 = vand.u32 %v255, 2139095040
        %v679 = vshrl.u32 %v678, 23
        %v680 = vsub.s32 %v679, 127
        %v681 = vand.u32 2147483647, %v255
        %v682 = vand.u32 %v681, 8388607
        %v683 = vor.u32 %v682, 8388608
        %v684 = vsub.s32 0, %v683
        %v685 = vadd.s32 %v680, 1
        %vm686 = vcmp.gt.s32.totalorder %v685, 0
        %v687 = vsel %vm686, %v685, 0
        %v688 = vshrl.u32 %v687, 5
        %v689 = vand.u32 %v687, 31
        %v690 = vsub.s32 32, %v689
        %v691 = vshrl.u32 683565275, %v690
        %v692 = vshll.u32 683565275, %v689
        %v693 = vshrl.u32 2475754826, %v690
        %v694 = vor.u32 %v692, %v693
        %v695 = vshll.u32 2475754826, %v689
        %v696 = vshrl.u32 2131351028, %v690
        %v697 = vor.u32 %v695, %v696
        %v698 = vshll.u32 2131351028, %v689
        %v699 = vshrl.u32 2102212464, %v690
        %v700 = vor.u32 %v698, %v699
        %v701 = vshll.u32 2102212464, %v689
        %v702 = vshrl.u32 920167782, %v690
        %v703 = vor.u32 %v701, %v702
        %v704 = vshll.u32 920167782, %v689
        %v705 = vshrl.u32 1326507024, %v690
        %v706 = vor.u32 %v704, %v705
        %vm707 = vcmp.lt.s32.totalorder %v688, 1
        %vm708 = vcmp.lt.s32.totalorder %v688, 2
        %vm709 = vcmp.lt.s32.totalorder %v688, 3
        %vm710 = vcmp.lt.s32.totalorder %v688, 4
        %v711 = vsel %vm707, %v691, %v694
        %v712 = vsel %vm710, %v700, 2102212464
        %v713 = vsel %vm709, %v697, %v712
        %v714 = vsel %vm708, %v711, %v713
        %v715 = vsel %vm707, %v694, %v697
        %v716 = vsel %vm710, %v703, 920167782
        %v717 = vsel %vm709, %v700, %v716
        %v718 = vsel %vm708, %v715, %v717
        %v719 = vsel %vm707, %v697, %v700
        %v720 = vsel %vm710, %v706, 1326507024
        %v721 = vsel %vm709, %v703, %v720
        %v722 = vsel %vm708, %v719, %v721
        %v723 = vshll.u32 %v683, 8
        %v724 = vmul.u32.u64.compose %v723, %v722
        %v725 = vextract.low.u32 %v724
        %v726 = vextract.high.u32 %v724
        %v727 = vmul.u32.u64.compose %v723, %v718
        %v728 = vextract.low.u32 %v727
        %v729 = vextract.high.u32 %v727
        %v730 = vmul.u32 %v723, %v714
        %v731 = vadd.s32 %v726, %v728
        %vm732 = vc.u32 %v726, %v728
        %v733 = vadd.s32 %v729, 1
        %v734 = vsel %vm732, %v733, %v729
        %v735 = vadd.s32 %v730, %v734
        %v736 = vadd.s32 %v735, 536870912
        %v737 = vshrl.u32 %v736, 30
        %v738 = vshll.u32 %v737, 30
        %v739 = vsub.s32 %v735, %v738
        %vm740 = vcmp.lt.s32.totalorder %v739, 0
        %v741 = vsub.s32 0, %v739
        %v742 = vsel %vm740, %v741, %v739
        %v743 = vclz %v742
        %v744 = vsub.s32 %v743, 2
        %vm745 = vcmp.gt.s32.totalorder 0, %v744
        %v746 = vsel %vm745, 0, %v744
        %v747 = vsub.s32 32, %v746
        %v748 = vshll.u32 %v739, %v746
        %v749 = vshrl.u32 %v731, %v747
        %v750 = vor.u32 %v748, %v749
        %v751 = vsub.s32 4294967266, %v746
        %v752 = vadd.s32 %v751, 127
        %v753 = vshll.u32 %v752, 23
        %v754 = vor.u32 4788187, %v753
        %v755 = vand.u32 2147483647, %v754
        %v757 = vcvt.s32.f32 %v750
        %v758 = vmul.f32 %v757, %v755
        %v759 = vxor.u32 %v758, 2147483648
        %v760 = vsel %vm677, %v759, %v758
        %v761 = vsub.s32 4, %v737
        %v762 = vsel %vm677, %v761, %v737
        %v763 = vsel %vm676, %v255, %v760
        %v764 = vsel %vm676, 0, %v762
        %v765 = vcosq.f32.pop %v763
        %v766 = vsinq.f32.pop %v763
        %vm767 = vweird.f32 %v255
        %v768 = vadd.s32 %v764, 3
        %v769 = vand.u32 %v768, 3
        %vm770 = vcmp.lt.s32.totalorder %v769, 2
        %vm771 = vcmp.eq.s32.totalorder %v769, 0
        %v772 = vxor.u32 %v766, 2147483648
        %v773 = vsel %vm771, %v765, %v772
        %vm774 = vcmp.eq.s32.totalorder %v769, 2
        %v775 = vxor.u32 %v765, 2147483648
        %v776 = vsel %vm774, %v775, %v766
        %v777 = vsel %vm770, %v773, %v776
        %v778 = vsel %vm767, nan, %v777
        %v779 = vand.u32 2147483647, %v256
        %vm780 = vcmp.le.f32.partialorder %v779, 0.7853982
        %vm781 = vcmp.lt.s32.totalorder %v256, 0
        %v782 = vand.u32 %v256, 2139095040
        %v783 = vshrl.u32 %v782, 23
        %v784 = vsub.s32 %v783, 127
        %v785 = vand.u32 2147483647, %v256
        %v786 = vand.u32 %v785, 8388607
        %v787 = vor.u32 %v786, 8388608
        %v788 = vsub.s32 0, %v787
        %v789 = vadd.s32 %v784, 1
        %vm790 = vcmp.gt.s32.totalorder %v789, 0
        %v791 = vsel %vm790, %v789, 0
        %v792 = vshrl.u32 %v791, 5
        %v793 = vand.u32 %v791, 31
        %v794 = vsub.s32 32, %v793
        %v795 = vshrl.u32 683565275, %v794
        %v796 = vshll.u32 683565275, %v793
        %v797 = vshrl.u32 2475754826, %v794
        %v798 = vor.u32 %v796, %v797
        %v799 = vshll.u32 2475754826, %v793
        %v800 = vshrl.u32 2131351028, %v794
        %v801 = vor.u32 %v799, %v800
        %v802 = vshll.u32 2131351028, %v793
        %v803 = vshrl.u32 2102212464, %v794
        %v804 = vor.u32 %v802, %v803
        %v805 = vshll.u32 2102212464, %v793
        %v806 = vshrl.u32 920167782, %v794
        %v807 = vor.u32 %v805, %v806
        %v808 = vshll.u32 920167782, %v793
        %v809 = vshrl.u32 1326507024, %v794
        %v810 = vor.u32 %v808, %v809
        %vm811 = vcmp.lt.s32.totalorder %v792, 1
        %vm812 = vcmp.lt.s32.totalorder %v792, 2
        %vm813 = vcmp.lt.s32.totalorder %v792, 3
        %vm814 = vcmp.lt.s32.totalorder %v792, 4
        %v815 = vsel %vm811, %v795, %v798
        %v816 = vsel %vm814, %v804, 2102212464
        %v817 = vsel %vm813, %v801, %v816
        %v818 = vsel %vm812, %v815, %v817
        %v819 = vsel %vm811, %v798, %v801
        %v820 = vsel %vm814, %v807, 920167782
        %v821 = vsel %vm813, %v804, %v820
        %v822 = vsel %vm812, %v819, %v821
        %v823 = vsel %vm811, %v801, %v804
        %v824 = vsel %vm814, %v810, 1326507024
        %v825 = vsel %vm813, %v807, %v824
        %v826 = vsel %vm812, %v823, %v825
        %v827 = vshll.u32 %v787, 8
        %v828 = vmul.u32.u64.compose %v827, %v826
        %v829 = vextract.low.u32 %v828
        %v830 = vextract.high.u32 %v828
        %v831 = vmul.u32.u64.compose %v827, %v822
        %v832 = vextract.low.u32 %v831
        %v833 = vextract.high.u32 %v831
        %v834 = vmul.u32 %v827, %v818
        %v835 = vadd.s32 %v830, %v832
        %vm836 = vc.u32 %v830, %v832
        %v837 = vadd.s32 %v833, 1
        %v838 = vsel %vm836, %v837, %v833
        %v839 = vadd.s32 %v834, %v838
        %v840 = vadd.s32 %v839, 536870912
        %v841 = vshrl.u32 %v840, 30
        %v842 = vshll.u32 %v841, 30
        %v843 = vsub.s32 %v839, %v842
        %vm844 = vcmp.lt.s32.totalorder %v843, 0
        %v845 = vsub.s32 0, %v843
        %v846 = vsel %vm844, %v845, %v843
        %v847 = vclz %v846
        %v848 = vsub.s32 %v847, 2
        %vm849 = vcmp.gt.s32.totalorder 0, %v848
        %v850 = vsel %vm849, 0, %v848
        %v851 = vsub.s32 32, %v850
        %v852 = vshll.u32 %v843, %v850
        %v853 = vshrl.u32 %v835, %v851
        %v854 = vor.u32 %v852, %v853
        %v855 = vsub.s32 4294967266, %v850
        %v856 = vadd.s32 %v855, 127
        %v857 = vshll.u32 %v856, 23
        %v858 = vor.u32 4788187, %v857
        %v859 = vand.u32 2147483647, %v858
        %v861 = vcvt.s32.f32 %v854
        %v862 = vmul.f32 %v861, %v859
        %v863 = vxor.u32 %v862, 2147483648
        %v864 = vsel %vm781, %v863, %v862
        %v865 = vsub.s32 4, %v841
        %v866 = vsel %vm781, %v865, %v841
        %v867 = vsel %vm780, %v256, %v864
        %v868 = vsel %vm780, 0, %v866
        %v869 = vcosq.f32.pop %v867
        %v870 = vsinq.f32.pop %v867
        %vm871 = vweird.f32 %v256
        %v872 = vadd.s32 %v868, 3
        %v873 = vand.u32 %v872, 3
        %vm874 = vcmp.lt.s32.totalorder %v873, 2
        %vm875 = vcmp.eq.s32.totalorder %v873, 0
        %v876 = vxor.u32 %v870, 2147483648
        %v877 = vsel %vm875, %v869, %v876
        %vm878 = vcmp.eq.s32.totalorder %v873, 2
        %v879 = vxor.u32 %v869, 2147483648
        %v880 = vsel %vm878, %v879, %v870
        %v881 = vsel %vm874, %v877, %v880
        %v882 = vsel %vm871, nan, %v881
        %v883 = vand.u32 2147483647, %v257
        %vm884 = vcmp.le.f32.partialorder %v883, 0.7853982
        %vm885 = vcmp.lt.s32.totalorder %v257, 0
        %v886 = vand.u32 %v257, 2139095040
        %v887 = vshrl.u32 %v886, 23
        %v888 = vsub.s32 %v887, 127
        %v889 = vand.u32 2147483647, %v257
        %v890 = vand.u32 %v889, 8388607
        %v891 = vor.u32 %v890, 8388608
        %v892 = vsub.s32 0, %v891
        %v893 = vadd.s32 %v888, 1
        %vm894 = vcmp.gt.s32.totalorder %v893, 0
        %v895 = vsel %vm894, %v893, 0
        %v896 = vshrl.u32 %v895, 5
        %v897 = vand.u32 %v895, 31
        %v898 = vsub.s32 32, %v897
        %v899 = vshrl.u32 683565275, %v898
        %v900 = vshll.u32 683565275, %v897
        %v901 = vshrl.u32 2475754826, %v898
        %v902 = vor.u32 %v900, %v901
        %v903 = vshll.u32 2475754826, %v897
        %v904 = vshrl.u32 2131351028, %v898
        %v905 = vor.u32 %v903, %v904
        %v906 = vshll.u32 2131351028, %v897
        %v907 = vshrl.u32 2102212464, %v898
        %v908 = vor.u32 %v906, %v907
        %v909 = vshll.u32 2102212464, %v897
        %v910 = vshrl.u32 920167782, %v898
        %v911 = vor.u32 %v909, %v910
        %v912 = vshll.u32 920167782, %v897
        %v913 = vshrl.u32 1326507024, %v898
        %v914 = vor.u32 %v912, %v913
        %vm915 = vcmp.lt.s32.totalorder %v896, 1
        %vm916 = vcmp.lt.s32.totalorder %v896, 2
        %vm917 = vcmp.lt.s32.totalorder %v896, 3
        %vm918 = vcmp.lt.s32.totalorder %v896, 4
        %v919 = vsel %vm915, %v899, %v902
        %v920 = vsel %vm918, %v908, 2102212464
        %v921 = vsel %vm917, %v905, %v920
        %v922 = vsel %vm916, %v919, %v921
        %v923 = vsel %vm915, %v902, %v905
        %v924 = vsel %vm918, %v911, 920167782
        %v925 = vsel %vm917, %v908, %v924
        %v926 = vsel %vm916, %v923, %v925
        %v927 = vsel %vm915, %v905, %v908
        %v928 = vsel %vm918, %v914, 1326507024
        %v929 = vsel %vm917, %v911, %v928
        %v930 = vsel %vm916, %v927, %v929
        %v931 = vshll.u32 %v891, 8
        %v932 = vmul.u32.u64.compose %v931, %v930
        %v933 = vextract.low.u32 %v932
        %v934 = vextract.high.u32 %v932
        %v935 = vmul.u32.u64.compose %v931, %v926
        %v936 = vextract.low.u32 %v935
        %v937 = vextract.high.u32 %v935
        %v938 = vmul.u32 %v931, %v922
        %v939 = vadd.s32 %v934, %v936
        %vm940 = vc.u32 %v934, %v936
        %v941 = vadd.s32 %v937, 1
        %v942 = vsel %vm940, %v941, %v937
        %v943 = vadd.s32 %v938, %v942
        %v944 = vadd.s32 %v943, 536870912
        %v945 = vshrl.u32 %v944, 30
        %v946 = vshll.u32 %v945, 30
        %v947 = vsub.s32 %v943, %v946
        %vm948 = vcmp.lt.s32.totalorder %v947, 0
        %v949 = vsub.s32 0, %v947
        %v950 = vsel %vm948, %v949, %v947
        %v951 = vclz %v950
        %v952 = vsub.s32 %v951, 2
        %vm953 = vcmp.gt.s32.totalorder 0, %v952
        %v954 = vsel %vm953, 0, %v952
        %v955 = vsub.s32 32, %v954
        %v956 = vshll.u32 %v947, %v954
        %v957 = vshrl.u32 %v939, %v955
        %v958 = vor.u32 %v956, %v957
        %v959 = vsub.s32 4294967266, %v954
        %v960 = vadd.s32 %v959, 127
        %v961 = vshll.u32 %v960, 23
        %v962 = vor.u32 4788187, %v961
        %v963 = vand.u32 2147483647, %v962
        %v965 = vcvt.s32.f32 %v958
        %v966 = vmul.f32 %v965, %v963
        %v967 = vxor.u32 %v966, 2147483648
        %v968 = vsel %vm885, %v967, %v966
        %v969 = vsub.s32 4, %v945
        %v970 = vsel %vm885, %v969, %v945
        %v971 = vsel %vm884, %v257, %v968
        %v972 = vsel %vm884, 0, %v970
        %v973 = vcosq.f32.pop %v971
        %v974 = vsinq.f32.pop %v971
        %vm975 = vweird.f32 %v257
        %v976 = vadd.s32 %v972, 3
        %v977 = vand.u32 %v976, 3
        %vm978 = vcmp.lt.s32.totalorder %v977, 2
        %vm979 = vcmp.eq.s32.totalorder %v977, 0
        %v980 = vxor.u32 %v974, 2147483648
        %v981 = vsel %vm979, %v973, %v980
        %vm982 = vcmp.eq.s32.totalorder %v977, 2
        %v983 = vxor.u32 %v973, 2147483648
        %v984 = vsel %vm982, %v983, %v974
        %v985 = vsel %vm978, %v981, %v984
        %v986 = vsel %vm975, nan, %v985
        %v987 = vand.u32 2147483647, %v258
        %vm988 = vcmp.le.f32.partialorder %v987, 0.7853982
        %vm989 = vcmp.lt.s32.totalorder %v258, 0
        %v990 = vand.u32 %v258, 2139095040
        %v991 = vshrl.u32 %v990, 23
        %v992 = vsub.s32 %v991, 127
        %v993 = vand.u32 2147483647, %v258
        %v994 = vand.u32 %v993, 8388607
        %v995 = vor.u32 %v994, 8388608
        %v996 = vsub.s32 0, %v995
        %v997 = vadd.s32 %v992, 1
        %vm998 = vcmp.gt.s32.totalorder %v997, 0
        %v999 = vsel %vm998, %v997, 0
        %v1000 = vshrl.u32 %v999, 5
        %v1001 = vand.u32 %v999, 31
        %v1002 = vsub.s32 32, %v1001
        %v1003 = vshrl.u32 683565275, %v1002
        %v1004 = vshll.u32 683565275, %v1001
        %v1005 = vshrl.u32 2475754826, %v1002
        %v1006 = vor.u32 %v1004, %v1005
        %v1007 = vshll.u32 2475754826, %v1001
        %v1008 = vshrl.u32 2131351028, %v1002
        %v1009 = vor.u32 %v1007, %v1008
        %v1010 = vshll.u32 2131351028, %v1001
        %v1011 = vshrl.u32 2102212464, %v1002
        %v1012 = vor.u32 %v1010, %v1011
        %v1013 = vshll.u32 2102212464, %v1001
        %v1014 = vshrl.u32 920167782, %v1002
        %v1015 = vor.u32 %v1013, %v1014
        %v1016 = vshll.u32 920167782, %v1001
        %v1017 = vshrl.u32 1326507024, %v1002
        %v1018 = vor.u32 %v1016, %v1017
        %vm1019 = vcmp.lt.s32.totalorder %v1000, 1
        %vm1020 = vcmp.lt.s32.totalorder %v1000, 2
        %vm1021 = vcmp.lt.s32.totalorder %v1000, 3
        %vm1022 = vcmp.lt.s32.totalorder %v1000, 4
        %v1023 = vsel %vm1019, %v1003, %v1006
        %v1024 = vsel %vm1022, %v1012, 2102212464
        %v1025 = vsel %vm1021, %v1009, %v1024
        %v1026 = vsel %vm1020, %v1023, %v1025
        %v1027 = vsel %vm1019, %v1006, %v1009
        %v1028 = vsel %vm1022, %v1015, 920167782
        %v1029 = vsel %vm1021, %v1012, %v1028
        %v1030 = vsel %vm1020, %v1027, %v1029
        %v1031 = vsel %vm1019, %v1009, %v1012
        %v1032 = vsel %vm1022, %v1018, 1326507024
        %v1033 = vsel %vm1021, %v1015, %v1032
        %v1034 = vsel %vm1020, %v1031, %v1033
        %v1035 = vshll.u32 %v995, 8
        %v1036 = vmul.u32.u64.compose %v1035, %v1034
        %v1037 = vextract.low.u32 %v1036
        %v1038 = vextract.high.u32 %v1036
        %v1039 = vmul.u32.u64.compose %v1035, %v1030
        %v1040 = vextract.low.u32 %v1039
        %v1041 = vextract.high.u32 %v1039
        %v1042 = vmul.u32 %v1035, %v1026
        %v1043 = vadd.s32 %v1038, %v1040
        %vm1044 = vc.u32 %v1038, %v1040
        %v1045 = vadd.s32 %v1041, 1
        %v1046 = vsel %vm1044, %v1045, %v1041
        %v1047 = vadd.s32 %v1042, %v1046
        %v1048 = vadd.s32 %v1047, 536870912
        %v1049 = vshrl.u32 %v1048, 30
        %v1050 = vshll.u32 %v1049, 30
        %v1051 = vsub.s32 %v1047, %v1050
        %vm1052 = vcmp.lt.s32.totalorder %v1051, 0
        %v1053 = vsub.s32 0, %v1051
        %v1054 = vsel %vm1052, %v1053, %v1051
        %v1055 = vclz %v1054
        %v1056 = vsub.s32 %v1055, 2
        %vm1057 = vcmp.gt.s32.totalorder 0, %v1056
        %v1058 = vsel %vm1057, 0, %v1056
        %v1059 = vsub.s32 32, %v1058
        %v1060 = vshll.u32 %v1051, %v1058
        %v1061 = vshrl.u32 %v1043, %v1059
        %v1062 = vor.u32 %v1060, %v1061
        %v1063 = vsub.s32 4294967266, %v1058
        %v1064 = vadd.s32 %v1063, 127
        %v1065 = vshll.u32 %v1064, 23
        %v1066 = vor.u32 4788187, %v1065
        %v1067 = vand.u32 2147483647, %v1066
        %v1069 = vcvt.s32.f32 %v1062
        %v1070 = vmul.f32 %v1069, %v1067
        %v1071 = vxor.u32 %v1070, 2147483648
        %v1072 = vsel %vm989, %v1071, %v1070
        %v1073 = vsub.s32 4, %v1049
        %v1074 = vsel %vm989, %v1073, %v1049
        %v1075 = vsel %vm988, %v258, %v1072
        %v1076 = vsel %vm988, 0, %v1074
        %v1077 = vcosq.f32.pop %v1075
        %v1078 = vsinq.f32.pop %v1075
        %vm1079 = vweird.f32 %v258
        %v1080 = vadd.s32 %v1076, 3
        %v1081 = vand.u32 %v1080, 3
        %vm1082 = vcmp.lt.s32.totalorder %v1081, 2
        %vm1083 = vcmp.eq.s32.totalorder %v1081, 0
        %v1084 = vxor.u32 %v1078, 2147483648
        %v1085 = vsel %vm1083, %v1077, %v1084
        %vm1086 = vcmp.eq.s32.totalorder %v1081, 2
        %v1087 = vxor.u32 %v1077, 2147483648
        %v1088 = vsel %vm1086, %v1087, %v1078
        %v1089 = vsel %vm1082, %v1085, %v1088
        %v1090 = vsel %vm1079, nan, %v1089
        %1091 = vst [vmem:[%s186] sm:$0xff] %v362
        %1092 = vst [vmem:[%s186 + $0x8] sm:$0xff] %v466
        %1093 = vst [vmem:[%s186 + $0x10] sm:$0xff] %v570
        %1094 = vst [vmem:[%s186 + $0x18] sm:$0xff] %v674
        %1095 = vst [vmem:[%s186 + $0x20] sm:$0xff] %v778
        %1096 = vst [vmem:[%s186 + $0x28] sm:$0xff] %v882
        %1097 = vst [vmem:[%s186 + $0x30] sm:$0xff] %v986
        %1098 = vst [vmem:[%s186 + $0x38] sm:$0xff] %v1090
        %s1099 = sand.u32 %s96, 1
        %s1100 = scalar_lea.sflag [#allocation4], %s1099
        %s1101 = sand.u32 %s96, 1
        %s1102 = smul.addr %s1101, 64
        %s1103 = scalar_lea.vmem [#allocation5], %s1102
        // Predicated region
        $region37: #{tpu_custom_call.1} parent=31 // pred_check
          %p1104 = pneg %p106
        $region38: #{tpu_custom_call.1} parent=31 // pred_check_branch
          %1106 = sbr.rel (%p1104) target = $region40
        $region39: #{tpu_custom_call.1} parent=31 // pred_region
          %s1107 = smul.u32 8, %s20
          %s1109 = ssub.s32 1024, 1024
          %1110 = vsyncadd %s1100, %s1109
          %s1111 = smul.addr %s1107, 128
          %s1112 = scalar_lea.hbm %s3, %s1111
          %s1114 = sshll.u32 %s1103, 4
          %s1115 = int_to_ptr.vmem [resolvable:$true] %s1114
          %1117 = dma.vmem_to_hbm [thread:$0]  %s1115, 1024, %s1112, %s1100
        $region40: #{tpu_custom_call.1} parent=31 // pred_fallthru
          _
      $region32: #{tpu_custom_call.1} parent=5 // pred_fallthru
        _
      %p1118 = scmp.le.s32.totalorder 2, %s15
      // Predicated region
      $region41: #{tpu_custom_call.1} parent=5 // pred_check
        %p1119 = pneg %p1118
      $region42: #{tpu_custom_call.1} parent=5 // pred_check_branch
        %1121 = sbr.rel (%p1119) target = $region44
      $region43: #{tpu_custom_call.1} parent=5 // pred_region
        %s1122 = ssub.s32 %s15, 2
        // Predicated region
        $region45: #{tpu_custom_call.1} parent=43 // pred_check
          %p1123 = pneg %p112
        $region46: #{tpu_custom_call.1} parent=43 // pred_check_branch
          %1125 = sbr.rel (%p1123) target = $region48
        $region47: #{tpu_custom_call.1} parent=43 // pred_region
          %s1126 = sand.u32 %s97, 1
          %s1127 = scalar_lea.sflag [#allocation4], %s1126
          %s1128 = sand.u32 %s97, 1
          %s1129 = smul.addr %s1128, 64
          %s1130 = scalar_lea.vmem [#allocation5], %s1129
          %1131 = dma.done %s1127, 1024
        $region48: #{tpu_custom_call.1} parent=43 // pred_fallthru
          _
      $region44: #{tpu_custom_call.1} parent=5 // pred_fallthru
        _
    $region6: #{tpu_custom_call.1} parent=1 // loop_footer
      %s19 = sadd.s32 1, %s15
    $region7: #{tpu_custom_call.1} parent=1 // loop_footer_branch
      %14 = sbr.rel target = $region3
    $region8: #{tpu_custom_call.1} parent=1 // loop_exit
      _
    %1132 = vsyncpa [#allocation3], 1
    %s1133 = scalar_lea.sflag [#allocation3], 1
    %1134 = vsyncpa %s1133, 1
    %1135 = vsyncpa [#allocation4], 1
    %s1136 = scalar_lea.sflag [#allocation4], 1
    %1137 = vsyncpa %s1136, 1

</llo_original>
